<compile_context>
chip_gen: v6e
topology: v6e:2x2x1
jax: 0.10.0
libtpu: 0.0.40
codegen_flags: <defaults>
</compile_context>

<pallas_src>
import functools

import jax
import jax.numpy as jnp
from jax.experimental import pallas as pl
from jax.experimental.pallas import tpu as pltpu


# --------------------------------------------------------------------------- kernel


def _attention_kernel(*refs, n_head, has_mask, has_attn):
    """One grid step: a (B_tile, L, C) batch-major slab.

    refs = (x, [mask], in_wT, in_b, out_wT, out_b, y, [attn_probs], ctx_scratch)
    """
    it = iter(refs)
    x_ref = next(it)
    mask_ref = next(it) if has_mask else None
    inw_ref = next(it)
    inb_ref = next(it)
    outw_ref = next(it)
    outb_ref = next(it)
    y_ref = next(it)
    attn_ref = next(it) if has_attn else None
    ctx_ref = next(it)

    B, L, C = x_ref.shape
    hd = C // n_head

    # ---- in_proj over the flattened (B*L, C) slab (MXU M = B*L); bf16 operands,
    #      f32 accumulation; result cast straight back to bf16 (smallest live temp).
    x = x_ref[...].reshape(B * L, C).astype(jnp.bfloat16)
    qkv = jnp.dot(x, inw_ref[...], preferred_element_type=jnp.float32)
    qkv = (qkv + inb_ref[...]).astype(jnp.bfloat16)           # (B*L, 3C) bf16
    qkv = qkv.reshape(B, L, 3 * C)                            # leading-dim split (free)

    if has_mask:
        mask = jnp.broadcast_to(mask_ref[...].astype(jnp.float32), (B, L, L))

    # Per-head attention, batched over the batch tile.  Each head's softmax probs
    # are written to the attention-probs output as soon as they are produced, and
    # its P@V context is slice-stored into the bf16 context scratch (no concat, no
    # per-head out_proj partial dots).
    for h in range(n_head):
        q_h = qkv[:, :, h * hd:(h + 1) * hd]                  # scale folded into W_in
        k_h = qkv[:, :, C + h * hd:C + (h + 1) * hd]
        v_h = qkv[:, :, 2 * C + h * hd:2 * C + (h + 1) * hd]

        s = jnp.einsum('bqd,bkd->bqk', q_h, k_h,
                       preferred_element_type=jnp.float32)    # (B, L, L) f32
        if has_mask:
            s = s + mask                                      # additive mask
        s = s - jnp.max(s, axis=-1, keepdims=True)
        p = jnp.exp(s)
        p = p * pl.reciprocal(jnp.sum(p, axis=-1, keepdims=True), approx=True)
        p = p.astype(jnp.bfloat16)

        if has_attn:
            # Returned attention weights (module returns post-softmax attn).
            attn_ref[:, h:h + 1, :, :] = p[:, None, :, :].astype(attn_ref.dtype)

        o_h = jnp.einsum('bqk,bkd->bqd', p, v_h,
                         preferred_element_type=jnp.float32)  # (B, L, hd) f32
        ctx_ref[:, :, h * hd:(h + 1) * hd] = o_h.astype(jnp.bfloat16)

    # ---- out_proj as ONE (B*L, C) @ (C, C) matmul (full MXU K depth).
    ctx = ctx_ref[...].reshape(B * L, C)
    y = jnp.dot(ctx, outw_ref[...], preferred_element_type=jnp.float32) + outb_ref[...]
    y_ref[...] = y.reshape(B, L, C).astype(y_ref.dtype)


# -------------------------------------------------------------------------- wrapper


def _vmem_capacity_bytes():
    """Per-TensorCore VMEM capacity; conservative fallback if the query fails."""
    try:
        info = pltpu.get_tpu_info()
        for name in ("vmem_capacity_bytes", "vmem_bytes", "vmem_size_bytes"):
            cap = getattr(info, name, None)
            if cap:
                return int(cap)
    except Exception:
        pass
    return 64 * 2 ** 20          # v7x per-core size: safe lower bound everywhere


def _vmem_bytes_estimate(b, L, C, H, has_mask, has_attn):
    f32, bf16 = 4, 2
    weights = (3 * C * C + C * C) * bf16 + (3 * C + C) * f32     # single-buffered
    mask = L * L * f32 if has_mask else 0                         # single-buffered
    x_blk = 2 * b * L * C * f32                                   # double-buffered
    y_blk = 2 * b * L * C * f32
    attn_blk = 2 * b * H * L * L * bf16 if has_attn else 0
    ctx = b * L * C * bf16                                        # context scratch
    live = (b * L * 3 * C * (f32 + bf16)     # in_proj f32 result + bf16 qkv
            + 3 * b * L * L * f32            # scores / probs / mask temporaries
            + 2 * b * L * C * f32)           # x bf16 copy + out_proj result (padded)
    return weights + mask + x_blk + y_blk + attn_blk + ctx + live


def _pick_batch_tile(N, L, C, H, has_mask, has_attn, budget):
    best = 1
    for d in range(1, N + 1):
        if N % d:
            continue
        if N >= 2 and N // d < 2:
            continue     # keep >= 2 grid steps so both v7x TensorCores get work
        if _vmem_bytes_estimate(d, L, C, H, has_mask, has_attn) <= budget:
            best = d
    return best


def _resident_spec(shape):
    """Constant-index, single-buffered spec: DMA'd once, never double-buffered."""
    index_map = lambda b: (0,) * len(shape)
    try:
        return pl.BlockSpec(tuple(shape), index_map, pipeline_mode=pl.Buffered(1))
    except Exception:    # older jax without pipeline_mode: fall back to default (2x)
        return pl.BlockSpec(tuple(shape), index_map)


def attention_nlc(x_nlc, params, n_head, attn_mask=None, batch_tile=None,
                  return_attn=True):
    """Batch-major core: x (N, L, C) -> (y (N, L, C), attn (N*H, L, L) bf16 | None)."""
    N, L, C = x_nlc.shape
    assert C % n_head == 0, "dim must be divisible by num_heads"
    H = n_head
    hd = C // H
    has_mask = attn_mask is not None

    capacity = _vmem_capacity_bytes()
    budget = int(0.75 * capacity)
    B = batch_tile if batch_tile is not None else _pick_batch_tile(
        N, L, C, H, has_mask, return_attn, budget)
    assert N % B == 0
    grid = (N // B,)

    args, in_specs = [], []
    args.append(x_nlc)
    in_specs.append(pl.BlockSpec((B, L, C), lambda b: (b, 0, 0)))

    if has_mask:
        m = attn_mask
        if m.dtype == jnp.bool_:
            # PyTorch semantics: True = disallowed -> additive -inf.
            m = jnp.where(m, -jnp.inf, 0.0)
        mask = m.astype(jnp.float32)
        assert mask.shape == (L, L)
        args.append(mask)
        in_specs.append(_resident_spec((L, L)))

    # Weights: bf16 MXU operands pre-transposed to (in, out); head_dim**-0.5 folded
    # into the Q rows of in_proj; biases kept in f32.
    scale = float(hd) ** -0.5
    in_w = params["in_proj_w"].astype(jnp.float32)                 # (3C, C)
    in_b = params["in_proj_b"].astype(jnp.float32)                 # (3C,)
    in_w = in_w.at[:C, :].multiply(scale)
    in_b = in_b.at[:C].multiply(scale)
    in_wT = in_w.T.astype(jnp.bfloat16)                            # (C, 3C)
    in_b = in_b.reshape(1, 3 * C)
    out_wT = params["out_proj_w"].T.astype(jnp.bfloat16)           # (C, C)
    out_b = params["out_proj_b"].reshape(1, C).astype(jnp.float32)
    for w in (in_wT, in_b, out_wT, out_b):
        args.append(w)
        in_specs.append(_resident_spec(w.shape))

    out_shapes = [jax.ShapeDtypeStruct((N, L, C), x_nlc.dtype)]
    out_specs = [pl.BlockSpec((B, L, C), lambda b: (b, 0, 0))]
    if return_attn:
        out_shapes.append(jax.ShapeDtypeStruct((N, H, L, L), jnp.bfloat16))
        out_specs.append(pl.BlockSpec((B, H, L, L), lambda b: (b, 0, 0, 0)))

    est = _vmem_bytes_estimate(B, L, C, H, has_mask, return_attn)
    vmem_limit = int(min(max(int(est * 1.25), 32 * 2 ** 20), int(0.80 * capacity)))

    kernel = functools.partial(_attention_kernel, n_head=H, has_mask=has_mask,
                               has_attn=return_attn)

    outs = pl.pallas_call(
        kernel,
        out_shape=tuple(out_shapes),
        grid_spec=pltpu.PrefetchScalarGridSpec(
            num_scalar_prefetch=0,
            grid=grid,
            in_specs=in_specs,
            out_specs=out_specs,
            scratch_shapes=[pltpu.VMEM((B, L, C), jnp.bfloat16)],   # per-head context
        ),
        compiler_params=pltpu.CompilerParams(
            dimension_semantics=("parallel",),
            vmem_limit_bytes=vmem_limit),
    )(*args)

    y_nlc = outs[0]
    if not return_attn:
        return y_nlc, None
    # (N, H, L, L) -> (N*H, L, L) is a free reshape and matches torch's n*H + h order.
    return y_nlc, outs[1].reshape(N * H, L, L)


def attention(x_lnc, params, n_head, attn_mask=None, batch_tile=None,
              return_attn=True):
    """PyTorch-layout wrapper: x (L, N, C) -> (y (L, N, C), attn (N*H, L, L)).

    Matching nn.MultiheadAttention's (L, N, C) layout costs one extra HBM round trip
    for the in/out transposes; batch-major callers should use attention_nlc directly.
    """
    x_nlc = jnp.transpose(x_lnc, (1, 0, 2))
    y_nlc, attn = attention_nlc(x_nlc, params, n_head, attn_mask=attn_mask,
                                batch_tile=batch_tile, return_attn=return_attn)
    return jnp.transpose(y_nlc, (1, 0, 2)), attn


# ----------------------------------------------------------------- reference / setup


def attention_reference(x_lnc, params, n_head, attn_mask=None):
    """Pure-JAX mirror of the PyTorch Attention.forward (default flags, eval mode)."""
    L, N, C = x_lnc.shape
    hd = C // n_head
    qkv = x_lnc @ params["in_proj_w"].T + params["in_proj_b"]          # (L, N, 3C)
    q, k, v = jnp.split(qkv, 3, axis=-1)

    def to_heads(t):
        return jnp.transpose(t.reshape(L, N * n_head, hd), (1, 0, 2))  # (N*H, L, hd)

    q = to_heads(q) * (hd ** -0.5)
    k = to_heads(k)
    v = to_heads(v)
    s = jnp.einsum('bld,bmd->blm', q, k)
    if attn_mask is not None:
        m = attn_mask
        if m.dtype == jnp.bool_:
            m = jnp.where(m, -jnp.inf, 0.0)
        s = s + m.astype(s.dtype)
    p = jax.nn.softmax(s, axis=-1)
    o = jnp.einsum('blm,bmd->bld', p, v)                               # (N*H, L, hd)
    o = jnp.transpose(o, (1, 0, 2)).reshape(L, N, C)
    y = o @ params["out_proj_w"].T + params["out_proj_b"]
    return y, p


def init_params(key, dim):
    C = dim
    ks = jax.random.split(key, 4)
    s = 0.02
    return {
        "in_proj_w": s * jax.random.normal(ks[0], (3 * C, C), jnp.float32),
        "in_proj_b": s * jax.random.normal(ks[1], (3 * C,), jnp.float32),
        "out_proj_w": s * jax.random.normal(ks[2], (C, C), jnp.float32),
        "out_proj_b": s * jax.random.normal(ks[3], (C,), jnp.float32),
    }


if __name__ == "__main__":
    # Small shapes consistent with the module: seq L=8, batch N=2, dim C=32, 4 heads.
    L, N, C, n_head = 8, 2, 32, 4
    key = jax.random.PRNGKey(0)
    kx, kp = jax.random.split(key)
    x = jax.random.normal(kx, (L, N, C), jnp.float32)    # (seq, batch, dim)
    params = init_params(kp, C)

    # ---- no-mask path (mask specialized away: no zero mask DMA'd or added).
    y, attn = attention(x, params, n_head, attn_mask=None)
    y, attn = jax.block_until_ready(y), jax.block_until_ready(attn)
    assert y.shape == (L, N, C) and attn.shape == (N * n_head, L, L)
    y_ref, attn_ref = attention_reference(x, params, n_head)
    assert jnp.allclose(y, y_ref, rtol=1e-1, atol=2e-2)
    assert jnp.allclose(attn.astype(jnp.float32), attn_ref, rtol=1e-1, atol=2e-2)

    # ---- PyTorch-style boolean causal mask path (True = disallowed -> -inf).
    causal = ~jnp.tril(jnp.ones((L, L), dtype=bool))
    y2, attn2 = attention(x, params, n_head, attn_mask=causal)
    y2, attn2 = jax.block_until_ready(y2), jax.block_until_ready(attn2)
    y2_ref, attn2_ref = attention_reference(x, params, n_head, attn_mask=causal)
    assert jnp.allclose(y2, y2_ref, rtol=1e-1, atol=2e-2)
    assert jnp.allclose(attn2.astype(jnp.float32), attn2_ref, rtol=1e-1, atol=2e-2)

    # ---- attention-weights output skipped entirely (no probs HBM writeback).
    y3, attn3 = attention(x, params, n_head, attn_mask=None, return_attn=False)
    y3 = jax.block_until_ready(y3)
    assert attn3 is None
    assert jnp.allclose(y3, y_ref, rtol=1e-1, atol=2e-2)

    print("KERNEL_OK")
</pallas_src>

<mosaic_0001>
module attributes {stable_mosaic.version = 11 : i64} {
  func.func @_attention_kernel(%arg0: i32, %arg1: memref<1x8x32xf32, #tpu.memory_space<vmem>>, %arg2: memref<32x96xbf16, #tpu.memory_space<vmem>>, %arg3: memref<1x96xf32, #tpu.memory_space<vmem>>, %arg4: memref<32x32xbf16, #tpu.memory_space<vmem>>, %arg5: memref<1x32xf32, #tpu.memory_space<vmem>>, %arg6: memref<1x8x32xf32, #tpu.memory_space<vmem>>, %arg7: memref<1x4x8x8xbf16, #tpu.memory_space<vmem>>, %arg8: memref<1x8x32xbf16, #tpu.memory_space<vmem>>) attributes {dimension_semantics = [#tpu.dimension_semantics<parallel>], iteration_bounds = array<i64: 2>, scalar_prefetch = 0 : i64, scratch_operands = 1 : i64, tpu.core_type = #tpu.core_type<tc>, window_params = [{transform_indices = @transform_0, window_bounds = array<i64: 1, 8, 32>}, {pipeline_mode = #tpu.pipeline_mode<synchronous>, transform_indices = @transform_1, window_bounds = array<i64: 32, 96>}, {pipeline_mode = #tpu.pipeline_mode<synchronous>, transform_indices = @transform_2, window_bounds = array<i64: 1, 96>}, {pipeline_mode = #tpu.pipeline_mode<synchronous>, transform_indices = @transform_3, window_bounds = array<i64: 32, 32>}, {pipeline_mode = #tpu.pipeline_mode<synchronous>, transform_indices = @transform_4, window_bounds = array<i64: 1, 32>}, {transform_indices = @transform_5, window_bounds = array<i64: 1, 8, 32>}, {transform_indices = @transform_6, window_bounds = array<i64: 1, 4, 8, 8>}]} {
    %c0 = arith.constant 0 : index
    %c0_0 = arith.constant 0 : index
    %c0_1 = arith.constant 0 : index
    %0 = vector.load %arg1[%c0, %c0_0, %c0_1] : memref<1x8x32xf32, #tpu.memory_space<vmem>>, vector<1x8x32xf32>
    %1 = vector.shape_cast %0 : vector<1x8x32xf32> to vector<8x32xf32>
    %2 = arith.truncf %1 : vector<8x32xf32> to vector<8x32xbf16>
    %c0_2 = arith.constant 0 : index
    %c0_3 = arith.constant 0 : index
    %3 = vector.load %arg2[%c0_2, %c0_3] : memref<32x96xbf16, #tpu.memory_space<vmem>>, vector<32x96xbf16>
    %cst = arith.constant dense<0.000000e+00> : vector<8x96xf32>
    %4 = tpu.matmul %2, %3, %cst {dimension_numbers = #tpu.dot_dimension_numbers<[1], [0], [0], [1], [0, 0, 1, 1], [], []>} : vector<8x32xbf16>, vector<32x96xbf16>, vector<8x96xf32> -> vector<8x96xf32>
    %c0_4 = arith.constant 0 : index
    %c0_5 = arith.constant 0 : index
    %5 = vector.load %arg3[%c0_4, %c0_5] : memref<1x96xf32, #tpu.memory_space<vmem>>, vector<1x96xf32>
    %6 = vector.broadcast %5 : vector<1x96xf32> to vector<8x96xf32>
    %7 = arith.addf %4, %6 : vector<8x96xf32>
    %8 = arith.truncf %7 : vector<8x96xf32> to vector<8x96xbf16>
    %9 = vector.shape_cast %8 : vector<8x96xbf16> to vector<1x8x96xbf16>
    %10 = vector.extract_strided_slice %9 {offsets = [0, 0, 0], sizes = [1, 8, 8], strides = [1, 1, 1]} : vector<1x8x96xbf16> to vector<1x8x8xbf16>
    %11 = vector.extract_strided_slice %9 {offsets = [0, 0, 32], sizes = [1, 8, 8], strides = [1, 1, 1]} : vector<1x8x96xbf16> to vector<1x8x8xbf16>
    %12 = vector.extract_strided_slice %9 {offsets = [0, 0, 64], sizes = [1, 8, 8], strides = [1, 1, 1]} : vector<1x8x96xbf16> to vector<1x8x8xbf16>
    "tpu.trace_start"() <{level = 10 : i32, message = "bqd,bkd->bqk"}> : () -> ()
    %cst_6 = arith.constant dense<0.000000e+00> : vector<1x8x8xf32>
    %13 = tpu.matmul %10, %11, %cst_6 {dimension_numbers = #tpu.dot_dimension_numbers<[2], [2], [1], [1], [0, 0, 0, 1, 1, 1], [0], [0]>} : vector<1x8x8xbf16>, vector<1x8x8xbf16>, vector<1x8x8xf32> -> vector<1x8x8xf32>
    "tpu.trace_stop"() : () -> ()
    %cst_7 = arith.constant dense<0xFF800000> : vector<1x8xf32>
    %14 = vector.multi_reduction <maximumf>, %13, %cst_7 [2] : vector<1x8x8xf32> to vector<1x8xf32>
    %15 = vector.shape_cast %14 : vector<1x8xf32> to vector<1x8x1xf32>
    %16 = vector.broadcast %15 : vector<1x8x1xf32> to vector<1x8x8xf32>
    %17 = arith.subf %13, %16 : vector<1x8x8xf32>
    %18 = math.exp %17 : vector<1x8x8xf32>
    %cst_8 = arith.constant dense<0.000000e+00> : vector<1x8xf32>
    %19 = vector.multi_reduction <add>, %18, %cst_8 [2] : vector<1x8x8xf32> to vector<1x8xf32>
    %20 = vector.shape_cast %19 : vector<1x8xf32> to vector<1x8x1xf32>
    %21 = tpu.reciprocal %20 {approx = true} : vector<1x8x1xf32> -> vector<1x8x1xf32>
    %22 = vector.broadcast %21 : vector<1x8x1xf32> to vector<1x8x8xf32>
    %23 = arith.mulf %18, %22 : vector<1x8x8xf32>
    %24 = arith.truncf %23 : vector<1x8x8xf32> to vector<1x8x8xbf16>
    %25 = vector.shape_cast %24 : vector<1x8x8xbf16> to vector<1x1x8x8xbf16>
    %c0_9 = arith.constant 0 : index
    %c0_10 = arith.constant 0 : index
    %c0_11 = arith.constant 0 : index
    %c0_12 = arith.constant 0 : index
    %26 = vector.load %arg7[%c0_9, %c0_10, %c0_11, %c0_12] : memref<1x4x8x8xbf16, #tpu.memory_space<vmem>>, vector<1x1x8x8xbf16>
    tpu.vector_store %arg7[%c0_9, %c0_10, %c0_11, %c0_12], %25 {strides = array<i32>} : memref<1x4x8x8xbf16, #tpu.memory_space<vmem>>, vector<1x1x8x8xbf16>,
    "tpu.trace_start"() <{level = 10 : i32, message = "bqk,bkd->bqd"}> : () -> ()
    %cst_13 = arith.constant dense<0.000000e+00> : vector<1x8x8xf32>
    %27 = tpu.matmul %24, %12, %cst_13 {dimension_numbers = #tpu.dot_dimension_numbers<[2], [1], [1], [2], [0, 0, 0, 1, 1, 2], [0], [0]>} : vector<1x8x8xbf16>, vector<1x8x8xbf16>, vector<1x8x8xf32> -> vector<1x8x8xf32>
    "tpu.trace_stop"() : () -> ()
    %28 = arith.truncf %27 : vector<1x8x8xf32> to vector<1x8x8xbf16>
    %c0_14 = arith.constant 0 : index
    %c0_15 = arith.constant 0 : index
    %c0_16 = arith.constant 0 : index
    %29 = vector.load %arg8[%c0_14, %c0_15, %c0_16] : memref<1x8x32xbf16, #tpu.memory_space<vmem>>, vector<1x8x8xbf16>
    tpu.vector_store %arg8[%c0_14, %c0_15, %c0_16], %28 {strides = array<i32>} : memref<1x8x32xbf16, #tpu.memory_space<vmem>>, vector<1x8x8xbf16>,
    %30 = vector.extract_strided_slice %9 {offsets = [0, 0, 8], sizes = [1, 8, 8], strides = [1, 1, 1]} : vector<1x8x96xbf16> to vector<1x8x8xbf16>
    %31 = vector.extract_strided_slice %9 {offsets = [0, 0, 40], sizes = [1, 8, 8], strides = [1, 1, 1]} : vector<1x8x96xbf16> to vector<1x8x8xbf16>
    %32 = vector.extract_strided_slice %9 {offsets = [0, 0, 72], sizes = [1, 8, 8], strides = [1, 1, 1]} : vector<1x8x96xbf16> to vector<1x8x8xbf16>
    "tpu.trace_start"() <{level = 10 : i32, message = "bqd,bkd->bqk"}> : () -> ()
    %cst_17 = arith.constant dense<0.000000e+00> : vector<1x8x8xf32>
    %33 = tpu.matmul %30, %31, %cst_17 {dimension_numbers = #tpu.dot_dimension_numbers<[2], [2], [1], [1], [0, 0, 0, 1, 1, 1], [0], [0]>} : vector<1x8x8xbf16>, vector<1x8x8xbf16>, vector<1x8x8xf32> -> vector<1x8x8xf32>
    "tpu.trace_stop"() : () -> ()
    %cst_18 = arith.constant dense<0xFF800000> : vector<1x8xf32>
    %34 = vector.multi_reduction <maximumf>, %33, %cst_18 [2] : vector<1x8x8xf32> to vector<1x8xf32>
    %35 = vector.shape_cast %34 : vector<1x8xf32> to vector<1x8x1xf32>
    %36 = vector.broadcast %35 : vector<1x8x1xf32> to vector<1x8x8xf32>
    %37 = arith.subf %33, %36 : vector<1x8x8xf32>
    %38 = math.exp %37 : vector<1x8x8xf32>
    %cst_19 = arith.constant dense<0.000000e+00> : vector<1x8xf32>
    %39 = vector.multi_reduction <add>, %38, %cst_19 [2] : vector<1x8x8xf32> to vector<1x8xf32>
    %40 = vector.shape_cast %39 : vector<1x8xf32> to vector<1x8x1xf32>
    %41 = tpu.reciprocal %40 {approx = true} : vector<1x8x1xf32> -> vector<1x8x1xf32>
    %42 = vector.broadcast %41 : vector<1x8x1xf32> to vector<1x8x8xf32>
    %43 = arith.mulf %38, %42 : vector<1x8x8xf32>
    %44 = arith.truncf %43 : vector<1x8x8xf32> to vector<1x8x8xbf16>
    %45 = vector.shape_cast %44 : vector<1x8x8xbf16> to vector<1x1x8x8xbf16>
    %c0_20 = arith.constant 0 : index
    %c1 = arith.constant 1 : index
    %c0_21 = arith.constant 0 : index
    %c0_22 = arith.constant 0 : index
    %46 = vector.load %arg7[%c0_20, %c1, %c0_21, %c0_22] : memref<1x4x8x8xbf16, #tpu.memory_space<vmem>>, vector<1x1x8x8xbf16>
    tpu.vector_store %arg7[%c0_20, %c1, %c0_21, %c0_22], %45 {strides = array<i32>} : memref<1x4x8x8xbf16, #tpu.memory_space<vmem>>, vector<1x1x8x8xbf16>,
    "tpu.trace_start"() <{level = 10 : i32, message = "bqk,bkd->bqd"}> : () -> ()
    %cst_23 = arith.constant dense<0.000000e+00> : vector<1x8x8xf32>
    %47 = tpu.matmul %44, %32, %cst_23 {dimension_numbers = #tpu.dot_dimension_numbers<[2], [1], [1], [2], [0, 0, 0, 1, 1, 2], [0], [0]>} : vector<1x8x8xbf16>, vector<1x8x8xbf16>, vector<1x8x8xf32> -> vector<1x8x8xf32>
    "tpu.trace_stop"() : () -> ()
    %48 = arith.truncf %47 : vector<1x8x8xf32> to vector<1x8x8xbf16>
    %c0_24 = arith.constant 0 : index
    %c0_25 = arith.constant 0 : index
    %c8 = arith.constant 8 : index
    %49 = vector.load %arg8[%c0_24, %c0_25, %c8] : memref<1x8x32xbf16, #tpu.memory_space<vmem>>, vector<1x8x8xbf16>
    tpu.vector_store %arg8[%c0_24, %c0_25, %c8], %48 {strides = array<i32>} : memref<1x8x32xbf16, #tpu.memory_space<vmem>>, vector<1x8x8xbf16>,
    %50 = vector.extract_strided_slice %9 {offsets = [0, 0, 16], sizes = [1, 8, 8], strides = [1, 1, 1]} : vector<1x8x96xbf16> to vector<1x8x8xbf16>
    %51 = vector.extract_strided_slice %9 {offsets = [0, 0, 48], sizes = [1, 8, 8], strides = [1, 1, 1]} : vector<1x8x96xbf16> to vector<1x8x8xbf16>
    %52 = vector.extract_strided_slice %9 {offsets = [0, 0, 80], sizes = [1, 8, 8], strides = [1, 1, 1]} : vector<1x8x96xbf16> to vector<1x8x8xbf16>
    "tpu.trace_start"() <{level = 10 : i32, message = "bqd,bkd->bqk"}> : () -> ()
    %cst_26 = arith.constant dense<0.000000e+00> : vector<1x8x8xf32>
    %53 = tpu.matmul %50, %51, %cst_26 {dimension_numbers = #tpu.dot_dimension_numbers<[2], [2], [1], [1], [0, 0, 0, 1, 1, 1], [0], [0]>} : vector<1x8x8xbf16>, vector<1x8x8xbf16>, vector<1x8x8xf32> -> vector<1x8x8xf32>
    "tpu.trace_stop"() : () -> ()
    %cst_27 = arith.constant dense<0xFF800000> : vector<1x8xf32>
    %54 = vector.multi_reduction <maximumf>, %53, %cst_27 [2] : vector<1x8x8xf32> to vector<1x8xf32>
    %55 = vector.shape_cast %54 : vector<1x8xf32> to vector<1x8x1xf32>
    %56 = vector.broadcast %55 : vector<1x8x1xf32> to vector<1x8x8xf32>
    %57 = arith.subf %53, %56 : vector<1x8x8xf32>
    %58 = math.exp %57 : vector<1x8x8xf32>
    %cst_28 = arith.constant dense<0.000000e+00> : vector<1x8xf32>
    %59 = vector.multi_reduction <add>, %58, %cst_28 [2] : vector<1x8x8xf32> to vector<1x8xf32>
    %60 = vector.shape_cast %59 : vector<1x8xf32> to vector<1x8x1xf32>
    %61 = tpu.reciprocal %60 {approx = true} : vector<1x8x1xf32> -> vector<1x8x1xf32>
    %62 = vector.broadcast %61 : vector<1x8x1xf32> to vector<1x8x8xf32>
    %63 = arith.mulf %58, %62 : vector<1x8x8xf32>
    %64 = arith.truncf %63 : vector<1x8x8xf32> to vector<1x8x8xbf16>
    %65 = vector.shape_cast %64 : vector<1x8x8xbf16> to vector<1x1x8x8xbf16>
    %c0_29 = arith.constant 0 : index
    %c2 = arith.constant 2 : index
    %c0_30 = arith.constant 0 : index
    %c0_31 = arith.constant 0 : index
    %66 = vector.load %arg7[%c0_29, %c2, %c0_30, %c0_31] : memref<1x4x8x8xbf16, #tpu.memory_space<vmem>>, vector<1x1x8x8xbf16>
    tpu.vector_store %arg7[%c0_29, %c2, %c0_30, %c0_31], %65 {strides = array<i32>} : memref<1x4x8x8xbf16, #tpu.memory_space<vmem>>, vector<1x1x8x8xbf16>,
    "tpu.trace_start"() <{level = 10 : i32, message = "bqk,bkd->bqd"}> : () -> ()
    %cst_32 = arith.constant dense<0.000000e+00> : vector<1x8x8xf32>
    %67 = tpu.matmul %64, %52, %cst_32 {dimension_numbers = #tpu.dot_dimension_numbers<[2], [1], [1], [2], [0, 0, 0, 1, 1, 2], [0], [0]>} : vector<1x8x8xbf16>, vector<1x8x8xbf16>, vector<1x8x8xf32> -> vector<1x8x8xf32>
    "tpu.trace_stop"() : () -> ()
    %68 = arith.truncf %67 : vector<1x8x8xf32> to vector<1x8x8xbf16>
    %c0_33 = arith.constant 0 : index
    %c0_34 = arith.constant 0 : index
    %c16 = arith.constant 16 : index
    %69 = vector.load %arg8[%c0_33, %c0_34, %c16] : memref<1x8x32xbf16, #tpu.memory_space<vmem>>, vector<1x8x8xbf16>
    tpu.vector_store %arg8[%c0_33, %c0_34, %c16], %68 {strides = array<i32>} : memref<1x8x32xbf16, #tpu.memory_space<vmem>>, vector<1x8x8xbf16>,
    %70 = vector.extract_strided_slice %9 {offsets = [0, 0, 24], sizes = [1, 8, 8], strides = [1, 1, 1]} : vector<1x8x96xbf16> to vector<1x8x8xbf16>
    %71 = vector.extract_strided_slice %9 {offsets = [0, 0, 56], sizes = [1, 8, 8], strides = [1, 1, 1]} : vector<1x8x96xbf16> to vector<1x8x8xbf16>
    %72 = vector.extract_strided_slice %9 {offsets = [0, 0, 88], sizes = [1, 8, 8], strides = [1, 1, 1]} : vector<1x8x96xbf16> to vector<1x8x8xbf16>
    "tpu.trace_start"() <{level = 10 : i32, message = "bqd,bkd->bqk"}> : () -> ()
    %cst_35 = arith.constant dense<0.000000e+00> : vector<1x8x8xf32>
    %73 = tpu.matmul %70, %71, %cst_35 {dimension_numbers = #tpu.dot_dimension_numbers<[2], [2], [1], [1], [0, 0, 0, 1, 1, 1], [0], [0]>} : vector<1x8x8xbf16>, vector<1x8x8xbf16>, vector<1x8x8xf32> -> vector<1x8x8xf32>
    "tpu.trace_stop"() : () -> ()
    %cst_36 = arith.constant dense<0xFF800000> : vector<1x8xf32>
    %74 = vector.multi_reduction <maximumf>, %73, %cst_36 [2] : vector<1x8x8xf32> to vector<1x8xf32>
    %75 = vector.shape_cast %74 : vector<1x8xf32> to vector<1x8x1xf32>
    %76 = vector.broadcast %75 : vector<1x8x1xf32> to vector<1x8x8xf32>
    %77 = arith.subf %73, %76 : vector<1x8x8xf32>
    %78 = math.exp %77 : vector<1x8x8xf32>
    %cst_37 = arith.constant dense<0.000000e+00> : vector<1x8xf32>
    %79 = vector.multi_reduction <add>, %78, %cst_37 [2] : vector<1x8x8xf32> to vector<1x8xf32>
    %80 = vector.shape_cast %79 : vector<1x8xf32> to vector<1x8x1xf32>
    %81 = tpu.reciprocal %80 {approx = true} : vector<1x8x1xf32> -> vector<1x8x1xf32>
    %82 = vector.broadcast %81 : vector<1x8x1xf32> to vector<1x8x8xf32>
    %83 = arith.mulf %78, %82 : vector<1x8x8xf32>
    %84 = arith.truncf %83 : vector<1x8x8xf32> to vector<1x8x8xbf16>
    %85 = vector.shape_cast %84 : vector<1x8x8xbf16> to vector<1x1x8x8xbf16>
    %c0_38 = arith.constant 0 : index
    %c3 = arith.constant 3 : index
    %c0_39 = arith.constant 0 : index
    %c0_40 = arith.constant 0 : index
    %86 = vector.load %arg7[%c0_38, %c3, %c0_39, %c0_40] : memref<1x4x8x8xbf16, #tpu.memory_space<vmem>>, vector<1x1x8x8xbf16>
    tpu.vector_store %arg7[%c0_38, %c3, %c0_39, %c0_40], %85 {strides = array<i32>} : memref<1x4x8x8xbf16, #tpu.memory_space<vmem>>, vector<1x1x8x8xbf16>,
    "tpu.trace_start"() <{level = 10 : i32, message = "bqk,bkd->bqd"}> : () -> ()
    %cst_41 = arith.constant dense<0.000000e+00> : vector<1x8x8xf32>
    %87 = tpu.matmul %84, %72, %cst_41 {dimension_numbers = #tpu.dot_dimension_numbers<[2], [1], [1], [2], [0, 0, 0, 1, 1, 2], [0], [0]>} : vector<1x8x8xbf16>, vector<1x8x8xbf16>, vector<1x8x8xf32> -> vector<1x8x8xf32>
    "tpu.trace_stop"() : () -> ()
    %88 = arith.truncf %87 : vector<1x8x8xf32> to vector<1x8x8xbf16>
    %c0_42 = arith.constant 0 : index
    %c0_43 = arith.constant 0 : index
    %c24 = arith.constant 24 : index
    %89 = vector.load %arg8[%c0_42, %c0_43, %c24] : memref<1x8x32xbf16, #tpu.memory_space<vmem>>, vector<1x8x8xbf16>
    tpu.vector_store %arg8[%c0_42, %c0_43, %c24], %88 {strides = array<i32>} : memref<1x8x32xbf16, #tpu.memory_space<vmem>>, vector<1x8x8xbf16>,
    %c0_44 = arith.constant 0 : index
    %c0_45 = arith.constant 0 : index
    %c0_46 = arith.constant 0 : index
    %90 = vector.load %arg8[%c0_44, %c0_45, %c0_46] : memref<1x8x32xbf16, #tpu.memory_space<vmem>>, vector<1x8x32xbf16>
    %91 = vector.shape_cast %90 : vector<1x8x32xbf16> to vector<8x32xbf16>
    %c0_47 = arith.constant 0 : index
    %c0_48 = arith.constant 0 : index
    %92 = vector.load %arg4[%c0_47, %c0_48] : memref<32x32xbf16, #tpu.memory_space<vmem>>, vector<32x32xbf16>
    %cst_49 = arith.constant dense<0.000000e+00> : vector<8x32xf32>
    %93 = tpu.matmul %91, %92, %cst_49 {dimension_numbers = #tpu.dot_dimension_numbers<[1], [0], [0], [1], [0, 0, 1, 1], [], []>} : vector<8x32xbf16>, vector<32x32xbf16>, vector<8x32xf32> -> vector<8x32xf32>
    %c0_50 = arith.constant 0 : index
    %c0_51 = arith.constant 0 : index
    %94 = vector.load %arg5[%c0_50, %c0_51] : memref<1x32xf32, #tpu.memory_space<vmem>>, vector<1x32xf32>
    %95 = vector.broadcast %94 : vector<1x32xf32> to vector<8x32xf32>
    %96 = arith.addf %93, %95 : vector<8x32xf32>
    %97 = vector.shape_cast %96 : vector<8x32xf32> to vector<1x8x32xf32>
    %c0_52 = arith.constant 0 : index
    %c0_53 = arith.constant 0 : index
    %c0_54 = arith.constant 0 : index
    %98 = vector.load %arg6[%c0_52, %c0_53, %c0_54] : memref<1x8x32xf32, #tpu.memory_space<vmem>>, vector<1x8x32xf32>
    tpu.vector_store %arg6[%c0_52, %c0_53, %c0_54], %97 {strides = array<i32>} : memref<1x8x32xf32, #tpu.memory_space<vmem>>, vector<1x8x32xf32>,
    return
  }
  func.func @transform_0(%arg0: i32) -> (i32, i32, i32) {
    %c0_i32 = arith.constant 0 : i32
    %c0_i32_0 = arith.constant 0 : i32
    %c0_i32_1 = arith.constant 0 : i32
    return %arg0, %c0_i32, %c0_i32_0 : i32, i32, i32
  }
  func.func @transform_1(%arg0: i32) -> (i32, i32) {
    %c0_i32 = arith.constant 0 : i32
    %c0_i32_0 = arith.constant 0 : i32
    %c0_i32_1 = arith.constant 0 : i32
    return %c0_i32, %c0_i32_0 : i32, i32
  }
  func.func @transform_2(%arg0: i32) -> (i32, i32) {
    %c0_i32 = arith.constant 0 : i32
    %c0_i32_0 = arith.constant 0 : i32
    %c0_i32_1 = arith.constant 0 : i32
    return %c0_i32, %c0_i32_0 : i32, i32
  }
  func.func @transform_3(%arg0: i32) -> (i32, i32) {
    %c0_i32 = arith.constant 0 : i32
    %c0_i32_0 = arith.constant 0 : i32
    %c0_i32_1 = arith.constant 0 : i32
    return %c0_i32, %c0_i32_0 : i32, i32
  }
  func.func @transform_4(%arg0: i32) -> (i32, i32) {
    %c0_i32 = arith.constant 0 : i32
    %c0_i32_0 = arith.constant 0 : i32
    %c0_i32_1 = arith.constant 0 : i32
    return %c0_i32, %c0_i32_0 : i32, i32
  }
  func.func @transform_5(%arg0: i32) -> (i32, i32, i32) {
    %c0_i32 = arith.constant 0 : i32
    %c0_i32_0 = arith.constant 0 : i32
    %c0_i32_1 = arith.constant 0 : i32
    return %arg0, %c0_i32, %c0_i32_0 : i32, i32, i32
  }
  func.func @transform_6(%arg0: i32) -> (i32, i32, i32, i32) {
    %c0_i32 = arith.constant 0 : i32
    %c0_i32_0 = arith.constant 0 : i32
    %c0_i32_1 = arith.constant 0 : i32
    %c0_i32_2 = arith.constant 0 : i32
    return %arg0, %c0_i32, %c0_i32_0, %c0_i32_1 : i32, i32, i32, i32
  }
}

</mosaic_0001>

<llo_original>
// kernel: tpu_custom_call.1
$region0: #{tpu_custom_call.1}
  #allocation0 [shape = 'u32[]', space=smem, size = 0x4, offset = 0x4, fixed_abs, tag = 'smem constant byte address 0x4 - core index']
  #allocation1 [shape = 'u32[144,128]{1,0:T(1,128)}', space=vmem, size = 0x12000, scoped, tag = 'internal scratch']
  #allocation2 [shape = 'bf16[1,8,32]{2,1,0:T(8,128)(2,1)}', space=vmem, size = 0x800, scoped, tag = 'scratch operand']
  %s0 = inlined_call_operand.hbm [shape: f32[2,8,32], index: 0, kind: input, shape index: {}]
  %s1 = inlined_call_operand.hbm [shape: bf16[32,96], index: 1, kind: input, shape index: {}]
  %s2 = inlined_call_operand.vmem [shape: f32[1,96], index: 2, kind: input, shape index: {}]
  %s3 = inlined_call_operand.hbm [shape: bf16[32,32], index: 3, kind: input, shape index: {}]
  %s4 = inlined_call_operand.vmem [shape: f32[1,32], index: 4, kind: input, shape index: {}]
  %s5 = inlined_call_operand.hbm [shape: f32[2,8,32], index: 5, kind: output, shape index: {0}]
  %s6 = inlined_call_operand.hbm [shape: bf16[2,4,8,8], index: 6, kind: output, shape index: {1}]
  %7 = xla_tuple %s5, %s6
  %s8 = sld [smem:[#allocation0]]
  $region73: #{tpu_custom_call.1} parent=0
    _
  %s10 = ssub.s32 1, %s8
  %s11 = scalar_select 0, %s10, %s8
  $region1: #{tpu_custom_call.1} parent=0
    #allocation3 [shape = 'u8[8192]{0}', space=vmem, size = 0x2000, scoped, tag = 'input window, operand 0']
    #allocation4 [shape = 's32[2]{0}', space=sflag, size = 0x8, scoped, tag = 'scoped memory for tpu_custom_call.1']
    #allocation5 [shape = 's32[2]{0}', space=sflag, size = 0x8, scoped, tag = 'scoped memory for tpu_custom_call.1']
    #allocation6 [shape = 'u8[8192]{0}', space=vmem, size = 0x2000, scoped, tag = 'input window, operand 1, single buffered']
    #allocation7 [shape = 's32[1]{0}', space=sflag, size = 0x4, scoped, tag = 'scoped memory for tpu_custom_call.1']
    #allocation8 [shape = 'u8[8192]{0}', space=vmem, size = 0x2000, scoped, tag = 'input window, operand 3, single buffered']
    #allocation9 [shape = 'u8[8192]{0}', space=vmem, size = 0x2000, scoped, tag = 'output window, operand 0']
    #allocation10 [shape = 'u8[16384]{0}', space=vmem, size = 0x4000, scoped, tag = 'output window, operand 1']
    #allocation11 [shape = 's32[2]{0}', space=sflag, size = 0x8, scoped, tag = 'scoped memory for tpu_custom_call.1']
    %12 = vsyncpa [#allocation4], 0
    %s13 = scalar_lea.sflag [#allocation4], 1
    %14 = vsyncpa %s13, 0
    %15 = vsyncpa [#allocation7], 0
    %16 = vsyncpa [#allocation5], 0
    %s17 = scalar_lea.sflag [#allocation5], 1
    %18 = vsyncpa %s17, 0
    %19 = vsyncpa [#allocation11], 0
    %s20 = scalar_lea.sflag [#allocation11], 1
    %21 = vsyncpa %s20, 0
    loop: start=0, step=1, limit=4
    $region2: #{tpu_custom_call.1} parent=1 // loop_pre_header
      _
    $region3: #{tpu_custom_call.1} parent=1 // loop_header
      %s23 = sphi 0, %s27
      %p24 = scmp.ge.s32.totalorder %s23, 4
      %s33 = sphi 0, %s35
      %s36 = sphi 0, %s33
      %s37 = sphi 0, %s36
      %s53 = sphi 0, %s37
      %s57 = sphi 0, %s57
      %s59 = sphi 0, %s57
      %s60 = sphi 0, %s59
      %s74 = sphi 0, %s60
      %s78 = sphi 0, %s78
      %s80 = sphi 0, %s78
      %s81 = sphi 0, %s80
      %s95 = sphi 0, %s81
      %s99 = sphi 0, %s99
      %s101 = sphi 0, %s99
      %s102 = sphi 0, %s101
      %s116 = sphi 0, %s102
      %s120 = sphi 0, %s120
      %s122 = sphi 0, %s120
      %s123 = sphi 0, %s122
      %s137 = sphi 0, %s123
      %s143 = sphi 0, %s145
      %s146 = sphi 0, %s143
      %s147 = sphi 0, %s146
      %s163 = sphi 0, %s147
      %s169 = sphi 0, %s171
      %s172 = sphi 0, %s169
      %s173 = sphi 0, %s172
      %s189 = sphi 0, %s173
    $region4: #{tpu_custom_call.1} parent=1 // loop_header_branch
      %26 = sbr.rel (%p24) target = $region8
    $region5: #{tpu_custom_call.1} parent=1 // loop_body
      %s28 = ssub.s32 %s23, 1
      %s29 = ssub.s32 %s23, 2
      %s30 = sadd.s32 %s23, 1
      %s31 = ssub.s32 %s23, %s30
      %p32 = scmp.eq.s32.totalorder %s31, 0
      %s34 = sadd.s32 %s33, 1
      %s35 = scalar_select %p32, %s33, %s34
      %p38 = pneg %p32
      %p39 = scmp.eq.s32.totalorder %s23, 1
      %p40 = por %p38, %p39
      %p41 = scmp.ne.s32.totalorder %s33, %s36
      %p42 = scmp.eq.s32.totalorder %s23, 0
      %p43 = por %p41, %p42
      %p44 = scmp.ne.s32.totalorder %s33, %s36
      %p45 = scmp.eq.s32.totalorder %s28, 1
      %p46 = por %p44, %p45
      %p47 = scmp.ne.s32.totalorder %s36, %s37
      %p48 = scmp.eq.s32.totalorder %s28, 0
      %p49 = por %p47, %p48
      %p50 = scmp.ne.s32.totalorder %s36, %s37
      %p51 = scmp.eq.s32.totalorder %s29, 1
      %p52 = por %p50, %p51
      %p54 = scmp.ne.s32.totalorder %s37, %s53
      %p55 = scmp.eq.s32.totalorder %s29, 0
      %p56 = por %p54, %p55
      %s58 = sadd.s32 %s57, 1
      %p61 = scmp.eq.s32.totalorder %s23, 1
      %p62 = scmp.ne.s32.totalorder %s57, %s59
      %p63 = scmp.eq.s32.totalorder %s23, 0
      %p64 = por %p62, %p63
      %p65 = scmp.ne.s32.totalorder %s57, %s59
      %p66 = scmp.eq.s32.totalorder %s28, 1
      %p67 = por %p65, %p66
      %p68 = scmp.ne.s32.totalorder %s59, %s60
      %p69 = scmp.eq.s32.totalorder %s28, 0
      %p70 = por %p68, %p69
      %p71 = scmp.ne.s32.totalorder %s59, %s60
      %p72 = scmp.eq.s32.totalorder %s29, 1
      %p73 = por %p71, %p72
      %p75 = scmp.ne.s32.totalorder %s60, %s74
      %p76 = scmp.eq.s32.totalorder %s29, 0
      %p77 = por %p75, %p76
      %s79 = sadd.s32 %s78, 1
      %p82 = scmp.eq.s32.totalorder %s23, 1
      %p83 = scmp.ne.s32.totalorder %s78, %s80
      %p84 = scmp.eq.s32.totalorder %s23, 0
      %p85 = por %p83, %p84
      %p86 = scmp.ne.s32.totalorder %s78, %s80
      %p87 = scmp.eq.s32.totalorder %s28, 1
      %p88 = por %p86, %p87
      %p89 = scmp.ne.s32.totalorder %s80, %s81
      %p90 = scmp.eq.s32.totalorder %s28, 0
      %p91 = por %p89, %p90
      %p92 = scmp.ne.s32.totalorder %s80, %s81
      %p93 = scmp.eq.s32.totalorder %s29, 1
      %p94 = por %p92, %p93
      %p96 = scmp.ne.s32.totalorder %s81, %s95
      %p97 = scmp.eq.s32.totalorder %s29, 0
      %p98 = por %p96, %p97
      %s100 = sadd.s32 %s99, 1
      %p103 = scmp.eq.s32.totalorder %s23, 1
      %p104 = scmp.ne.s32.totalorder %s99, %s101
      %p105 = scmp.eq.s32.totalorder %s23, 0
      %p106 = por %p104, %p105
      %p107 = scmp.ne.s32.totalorder %s99, %s101
      %p108 = scmp.eq.s32.totalorder %s28, 1
      %p109 = por %p107, %p108
      %p110 = scmp.ne.s32.totalorder %s101, %s102
      %p111 = scmp.eq.s32.totalorder %s28, 0
      %p112 = por %p110, %p111
      %p113 = scmp.ne.s32.totalorder %s101, %s102
      %p114 = scmp.eq.s32.totalorder %s29, 1
      %p115 = por %p113, %p114
      %p117 = scmp.ne.s32.totalorder %s102, %s116
      %p118 = scmp.eq.s32.totalorder %s29, 0
      %p119 = por %p117, %p118
      %s121 = sadd.s32 %s120, 1
      %p124 = scmp.eq.s32.totalorder %s23, 1
      %p125 = scmp.ne.s32.totalorder %s120, %s122
      %p126 = scmp.eq.s32.totalorder %s23, 0
      %p127 = por %p125, %p126
      %p128 = scmp.ne.s32.totalorder %s120, %s122
      %p129 = scmp.eq.s32.totalorder %s28, 1
      %p130 = por %p128, %p129
      %p131 = scmp.ne.s32.totalorder %s122, %s123
      %p132 = scmp.eq.s32.totalorder %s28, 0
      %p133 = por %p131, %p132
      %p134 = scmp.ne.s32.totalorder %s122, %s123
      %p135 = scmp.eq.s32.totalorder %s29, 1
      %p136 = por %p134, %p135
      %p138 = scmp.ne.s32.totalorder %s123, %s137
      %p139 = scmp.eq.s32.totalorder %s29, 0
      %p140 = por %p138, %p139
      %s141 = ssub.s32 %s23, %s30
      %p142 = scmp.eq.s32.totalorder %s141, 0
      %s144 = sadd.s32 %s143, 1
      %s145 = scalar_select %p142, %s143, %s144
      %p148 = pneg %p142
      %p149 = scmp.eq.s32.totalorder %s23, 1
      %p150 = por %p148, %p149
      %p151 = scmp.ne.s32.totalorder %s143, %s146
      %p152 = scmp.eq.s32.totalorder %s23, 0
      %p153 = por %p151, %p152
      %p154 = scmp.ne.s32.totalorder %s143, %s146
      %p155 = scmp.eq.s32.totalorder %s28, 1
      %p156 = por %p154, %p155
      %p157 = scmp.ne.s32.totalorder %s146, %s147
      %p158 = scmp.eq.s32.totalorder %s28, 0
      %p159 = por %p157, %p158
      %p160 = scmp.ne.s32.totalorder %s146, %s147
      %p161 = scmp.eq.s32.totalorder %s29, 1
      %p162 = por %p160, %p161
      %p164 = scmp.ne.s32.totalorder %s147, %s163
      %p165 = scmp.eq.s32.totalorder %s29, 0
      %p166 = por %p164, %p165
      %s167 = ssub.s32 %s23, %s30
      %p168 = scmp.eq.s32.totalorder %s167, 0
      %s170 = sadd.s32 %s169, 1
      %s171 = scalar_select %p168, %s169, %s170
      %p174 = pneg %p168
      %p175 = scmp.eq.s32.totalorder %s23, 1
      %p176 = por %p174, %p175
      %p177 = scmp.ne.s32.totalorder %s169, %s172
      %p178 = scmp.eq.s32.totalorder %s23, 0
      %p179 = por %p177, %p178
      %p180 = scmp.ne.s32.totalorder %s169, %s172
      %p181 = scmp.eq.s32.totalorder %s28, 1
      %p182 = por %p180, %p181
      %p183 = scmp.ne.s32.totalorder %s172, %s173
      %p184 = scmp.eq.s32.totalorder %s28, 0
      %p185 = por %p183, %p184
      %p186 = scmp.ne.s32.totalorder %s172, %s173
      %p187 = scmp.eq.s32.totalorder %s29, 1
      %p188 = por %p186, %p187
      %p190 = scmp.ne.s32.totalorder %s173, %s189
      %p191 = scmp.eq.s32.totalorder %s29, 0
      %p192 = por %p190, %p191
      %p193 = scmp.le.s32.totalorder 1, %s23
      %p194 = scmp.lt.s32.totalorder %s23, 3
      %p195 = pnand %p193, %p194
      %p196 = pneg %p195
      // Predicated region
      $region9: #{tpu_custom_call.1} parent=5 // pred_check
        _
      $region10: #{tpu_custom_call.1} parent=5 // pred_check_branch
        %198 = sbr.rel (%p195) target = $region12
      $region11: #{tpu_custom_call.1} parent=5 // pred_region
        %s199 = ssub.s32 %s23, 1
        // Predicated region
        $region13: #{tpu_custom_call.1} parent=11 // pred_check
          %p200 = pneg %p70
        $region14: #{tpu_custom_call.1} parent=11 // pred_check_branch
          %202 = sbr.rel (%p200) target = $region16
        $region15: #{tpu_custom_call.1} parent=11 // pred_region
          %s204 = ssub.s32 256, 256
          %205 = vsyncadd [#allocation7], %s204
          %s206 = sshll.u32 [#allocation6], 4
          %s207 = int_to_ptr.vmem [resolvable:$true] %s206
          %212 = dma.hbm_to_vmem [thread:$0]  %s1, 256, %s207, [#allocation7], 64, 64, 4
        $region16: #{tpu_custom_call.1} parent=11 // pred_fallthru
          _
        // Predicated region
        $region17: #{tpu_custom_call.1} parent=11 // pred_check
          %p213 = pneg %p91
        $region18: #{tpu_custom_call.1} parent=11 // pred_check_branch
          %215 = sbr.rel (%p213) target = $region20
        $region19: #{tpu_custom_call.1} parent=11 // pred_region
          _
        $region20: #{tpu_custom_call.1} parent=11 // pred_fallthru
          _
        // Predicated region
        $region21: #{tpu_custom_call.1} parent=11 // pred_check
          %p216 = pneg %p112
        $region22: #{tpu_custom_call.1} parent=11 // pred_check_branch
          %218 = sbr.rel (%p216) target = $region24
        $region23: #{tpu_custom_call.1} parent=11 // pred_region
          %s220 = ssub.s32 256, 256
          %221 = vsyncadd [#allocation7], %s220
          %s222 = sshll.u32 [#allocation8], 4
          %s223 = int_to_ptr.vmem [resolvable:$true] %s222
          %228 = dma.hbm_to_vmem [thread:$0]  %s3, 256, %s223, [#allocation7], 64, 64, 4
        $region24: #{tpu_custom_call.1} parent=11 // pred_fallthru
          _
        // Predicated region
        $region25: #{tpu_custom_call.1} parent=11 // pred_check
          %p229 = pneg %p133
        $region26: #{tpu_custom_call.1} parent=11 // pred_check_branch
          %231 = sbr.rel (%p229) target = $region28
        $region27: #{tpu_custom_call.1} parent=11 // pred_region
          _
        $region28: #{tpu_custom_call.1} parent=11 // pred_fallthru
          _
      $region12: #{tpu_custom_call.1} parent=5 // pred_fallthru
        _
      %p232 = scmp.lt.s32.totalorder %s23, 2
      // Predicated region
      $region29: #{tpu_custom_call.1} parent=5 // pred_check
        %p233 = pneg %p232
      $region30: #{tpu_custom_call.1} parent=5 // pred_check_branch
        %235 = sbr.rel (%p233) target = $region32
      $region31: #{tpu_custom_call.1} parent=5 // pred_region
        // Predicated region
        $region33: #{tpu_custom_call.1} parent=31 // pred_check
          %p236 = pneg %p43
        $region34: #{tpu_custom_call.1} parent=31 // pred_check_branch
          %238 = sbr.rel (%p236) target = $region36
        $region35: #{tpu_custom_call.1} parent=31 // pred_region
          %s239 = sand.u32 %s33, 1
          %s240 = scalar_lea.sflag [#allocation4], %s239
          %s241 = sand.u32 %s33, 1
          %s242 = smul.addr %s241, 8
          %s243 = scalar_lea.vmem [#allocation3], %s242
          %s245 = ssub.s32 128, 128
          %246 = vsyncadd %s240, %s245
          %s247 = smul.addr %s23, 128
          %s248 = scalar_lea.hbm %s0, %s247
          %s250 = sshll.u32 %s243, 4
          %s251 = int_to_ptr.vmem [resolvable:$true] %s250
          %253 = dma.hbm_to_vmem [thread:$0]  %s248, 128, %s251, %s240
        $region36: #{tpu_custom_call.1} parent=31 // pred_fallthru
          _
      $region32: #{tpu_custom_call.1} parent=5 // pred_fallthru
        _
      %p254 = scmp.le.s32.totalorder 1, %s23
      %p255 = scmp.lt.s32.totalorder %s23, 3
      %p256 = pnand %p254, %p255
      %p257 = pneg %p256
      // Predicated region
      $region37: #{tpu_custom_call.1} parent=5 // pred_check
        _
      $region38: #{tpu_custom_call.1} parent=5 // pred_check_branch
        %259 = sbr.rel (%p256) target = $region40
      $region39: #{tpu_custom_call.1} parent=5 // pred_region
        %s260 = ssub.s32 %s23, 1
        %s261 = sand.u32 %s36, 1
        %s262 = scalar_lea.sflag [#allocation4], %s261
        %s263 = sand.u32 %s36, 1
        %s264 = smul.addr %s263, 8
        %s265 = scalar_lea.vmem [#allocation3], %s264
        // Predicated region
        $region41: #{tpu_custom_call.1} parent=39 // pred_check
          %p266 = pneg %p49
        $region42: #{tpu_custom_call.1} parent=39 // pred_check_branch
          %268 = sbr.rel (%p266) target = $region44
        $region43: #{tpu_custom_call.1} parent=39 // pred_region
          %269 = dma.done %s262, 128
        $region44: #{tpu_custom_call.1} parent=39 // pred_fallthru
          _
        // Predicated region
        $region45: #{tpu_custom_call.1} parent=39 // pred_check
          %p270 = pneg %p70
        $region46: #{tpu_custom_call.1} parent=39 // pred_check_branch
          %272 = sbr.rel (%p270) target = $region48
        $region47: #{tpu_custom_call.1} parent=39 // pred_region
          %273 = dma.done [#allocation7], 256
        $region48: #{tpu_custom_call.1} parent=39 // pred_fallthru
          _
        // Predicated region
        $region49: #{tpu_custom_call.1} parent=39 // pred_check
          %p274 = pneg %p112
        $region50: #{tpu_custom_call.1} parent=39 // pred_check_branch
          %276 = sbr.rel (%p274) target = $region52
        $region51: #{tpu_custom_call.1} parent=39 // pred_region
          %277 = dma.done [#allocation7], 256
        $region52: #{tpu_custom_call.1} parent=39 // pred_fallthru
          _
        %s278 = sand.u32 %s36, 1
        %s279 = scalar_lea.sflag [#allocation4], %s278
        %s280 = sand.u32 %s36, 1
        %s281 = smul.addr %s280, 8
        %s282 = scalar_lea.vmem [#allocation3], %s281
        %p283 = pneg %p49
        %p284 = pneg %p46
        %p285 = pneg %p70
        %p286 = pneg %p67
        %p287 = pneg %p91
        %p288 = pneg %p88
        %p289 = pneg %p112
        %p290 = pneg %p109
        %p291 = pneg %p133
        %p292 = pneg %p130
        %p293 = pneg %p159
        %p294 = pneg %p156
        %s295 = sand.u32 %s146, 1
        %s296 = scalar_lea.sflag [#allocation5], %s295
        %s297 = sand.u32 %s146, 1
        %s298 = smul.addr %s297, 8
        %s299 = scalar_lea.vmem [#allocation9], %s298
        %p300 = pneg %p185
        %p301 = pneg %p182
        %s302 = sand.u32 %s172, 1
        %s303 = scalar_lea.sflag [#allocation11], %s302
        %s304 = sand.u32 %s172, 1
        %s305 = smul.addr %s304, 16
        %s306 = scalar_lea.vmem [#allocation10], %s305
        %v308 = vld [vmem:[%s265] sm:$0xff]
        %v309 = vpack.c.bf16 %v308, %v308
        %v310 = vld [vmem:[#allocation6] sm:$0xf]
        %v311 = vld [vmem:[#allocation6 + $0x4] sm:$0xf]
        %v312 = vld [vmem:[#allocation6 + $0x8] sm:$0xf]
        %v313 = vld [vmem:[#allocation6 + $0xc] sm:$0xf]
        %v314 = vld [vmem:[%s2] sm:$0x1]
        %v316 = vlaneseq
        %v317 = vshrl.u32 %v316, 7
        %v318 = vsub.s32 0, %v317
        %v319 = vrot.slane %v314, %v318
        %v325 = vunpack.c.l.b16 %v310
        %v326 = vunpack.c.l.b16 %v311
        %v327 = vunpack.c.l.b16 %v312
        %v328 = vunpack.c.l.b16 %v313
        %v329 = vpack.c.b16 %v326, %v325
        %v330 = vpack.c.b16 %v328, %v327
        %vm333 = vcmask 261120
        %v335 = vsel %vm333, %v309, 0
        %337 = vmatprep.subr.bf16.mxu0 0
        %338 = vmatpush1.bf16.msra.mxu0 0
        %339 = vmatprep.subr.bf16.mxu0 0
        %340 = vmatpush1.bf16.msra.mxu0 0
        %341 = vmatprep.subr.bf16.mxu0 0
        %342 = vmatpush1.bf16.msra.mxu0 0
        %343 = vmatprep.subr.bf16.mxu0 0
        %344 = vmatpush1.bf16.msra.mxu0 0
        %345 = vmatprep.subr.bf16.mxu0 0
        %346 = vmatpush1.bf16.msra.mxu0 0
        %347 = vmatprep.subr.bf16.mxu0 0
        %348 = vmatpush1.bf16.msra.mxu0 0
        %349 = vmatprep.subr.bf16.mxu0 0
        %350 = vmatpush1.bf16.msra.mxu0 %v330
        %351 = vmatprep.subr.bf16.mxu0 0
        %352 = vmatpush1.bf16.msra.mxu0 %v329
        %353 = vmatprep.subr.bf16.mxu0 0
        %354 = vmatpush2.bf16.msra.mxu0 0
        %355 = vmatprep.subr.bf16.mxu0 0
        %356 = vmatpush2.bf16.msra.mxu0 0
        %357 = vmatprep.subr.bf16.mxu0 0
        %358 = vmatpush2.bf16.msra.mxu0 0
        %359 = vmatprep.subr.bf16.mxu0 0
        %360 = vmatpush2.bf16.msra.mxu0 0
        %361 = vmatprep.subr.bf16.mxu0 0
        %362 = vmatpush2.bf16.msra.mxu0 0
        %363 = vmatprep.subr.bf16.mxu0 0
        %364 = vmatpush2.bf16.msra.mxu0 0
        %365 = vmatprep.subr.bf16.mxu0 0
        %366 = vmatpush2.bf16.msra.mxu0 0
        %367 = vmatprep.subr.bf16.mxu0 0
        %368 = vmatpush2.bf16.msra.mxu0 0
        %369 = vmatprep.mubr.bf16.mxu0 0
        %370 = vmatmul.mubr.bf16.gmra.mxu0 %v335
        %v371 = vpop.f32.mrf.mxu0
        %v372 = vadd.f32 %v319, %v371
        %v373 = vpop.f32.mrf.mxu0
        %v374 = vpop.f32.mrf.mxu0
        %v375 = vpop.f32.mrf.mxu0
        %376 = vdwg.mxu0
        %v377 = vpack.c.bf16 %v372, %v372
        %379 = vrot.lane.b32.xlu0 %v377, 96
        %v380 = vpop.permute.xlu0 %379
        %vm381 = vcmask 64512
        %v383 = vsel %vm381, %v377, 0
        %v386 = vsel %vm381, %v380, 0
        %388 = vmatprep.subr.bf16.mxu0 0
        %389 = vmatpush1.bf16.xpose.msra.mxu0 0
        %390 = vmatprep.subr.bf16.mxu0 0
        %391 = vmatpush1.bf16.xpose.msra.mxu0 0
        %392 = vmatprep.subr.bf16.mxu0 0
        %393 = vmatpush1.bf16.xpose.msra.mxu0 0
        %394 = vmatprep.subr.bf16.mxu0 0
        %395 = vmatpush1.bf16.xpose.msra.mxu0 0
        %396 = vmatprep.subr.bf16.mxu0 0
        %397 = vmatpush1.bf16.xpose.msra.mxu0 0
        %398 = vmatprep.subr.bf16.mxu0 0
        %399 = vmatpush1.bf16.xpose.msra.mxu0 0
        %400 = vmatprep.subr.bf16.mxu0 0
        %401 = vmatpush1.bf16.xpose.msra.mxu0 0
        %402 = vmatprep.subr.bf16.mxu0 0
        %403 = vmatpush1.bf16.xpose.msra.mxu0 %v386
        %404 = vmatprep.subr.bf16.mxu0 0
        %405 = vmatpush2.bf16.xpose.msra.mxu0 0
        %406 = vmatprep.subr.bf16.mxu0 0
        %407 = vmatpush2.bf16.xpose.msra.mxu0 0
        %408 = vmatprep.subr.bf16.mxu0 0
        %409 = vmatpush2.bf16.xpose.msra.mxu0 0
        %410 = vmatprep.subr.bf16.mxu0 0
        %411 = vmatpush2.bf16.xpose.msra.mxu0 0
        %412 = vmatprep.subr.bf16.mxu0 0
        %413 = vmatpush2.bf16.xpose.msra.mxu0 0
        %414 = vmatprep.subr.bf16.mxu0 0
        %415 = vmatpush2.bf16.xpose.msra.mxu0 0
        %416 = vmatprep.subr.bf16.mxu0 0
        %417 = vmatpush2.bf16.xpose.msra.mxu0 0
        %418 = vmatprep.subr.bf16.mxu0 0
        %419 = vmatpush2.bf16.xpose.msra.mxu0 0
        %420 = vmatprep.mubr.bf16.mxu0 0
        %421 = vmatmul.mubr.bf16.gmra.mxu0 %v383
        %v422 = vpop.f32.mrf.mxu0
        %v423 = vadd.f32 0.0, %v422
        %v424 = vpop.f32.mrf.mxu0
        %v425 = vpop.f32.mrf.mxu0
        %v426 = vpop.f32.mrf.mxu0
        %427 = vdwg.mxu0
        %v428 = vsel %vm381, %v423, -inf
        %429 = vmax.xlane.f32.xlu0 %v428
        %v430 = vpop.xlane.xlu0 %429
        %v431 = vsub.f32 %v423, %v430
        %v432 = vmul.f32 %v431, 1.442695
        %v433 = vpow.pop %v432
        %v434 = vsel %vm381, %v433, 0.0
        %435 = vadd.xlane.f32.xlu0 %v434
        %v436 = vpop.xlane.xlu0 %435
        %v437 = vrcp.pop %v436
        %v438 = vmul.f32 %v433, %v437
        %v439 = vpack.c.bf16 %v438, %v438
        %vm440 = vcmask 60416
        %441 = vst.msk [vmem:[%s306] sm:$0xf] %vm440, %v439
        %442 = vrot.lane.b32.xlu0 %v377, 64
        %v443 = vpop.permute.xlu0 %442
        %v445 = vsel %vm381, %v439, 0
        %vm447 = vcmask 1043456
        %v449 = vsel %vm447, %v443, 0
        %451 = vmatprep.subr.bf16.mxu0 0
        %452 = vmatpush1.bf16.msra.mxu0 0
        %453 = vmatprep.subr.bf16.mxu0 0
        %454 = vmatpush1.bf16.msra.mxu0 0
        %455 = vmatprep.subr.bf16.mxu0 0
        %456 = vmatpush1.bf16.msra.mxu0 0
        %457 = vmatprep.subr.bf16.mxu0 0
        %458 = vmatpush1.bf16.msra.mxu0 0
        %459 = vmatprep.subr.bf16.mxu0 0
        %460 = vmatpush1.bf16.msra.mxu0 0
        %461 = vmatprep.subr.bf16.mxu0 0
        %462 = vmatpush1.bf16.msra.mxu0 0
        %463 = vmatprep.subr.bf16.mxu0 0
        %464 = vmatpush1.bf16.msra.mxu0 0
        %465 = vmatprep.subr.bf16.mxu0 0
        %466 = vmatpush1.bf16.msra.mxu0 %v449
        %467 = vmatprep.subr.bf16.mxu0 0
        %468 = vmatpush2.bf16.msra.mxu0 0
        %469 = vmatprep.subr.bf16.mxu0 0
        %470 = vmatpush2.bf16.msra.mxu0 0
        %471 = vmatprep.subr.bf16.mxu0 0
        %472 = vmatpush2.bf16.msra.mxu0 0
        %473 = vmatprep.subr.bf16.mxu0 0
        %474 = vmatpush2.bf16.msra.mxu0 0
        %475 = vmatprep.subr.bf16.mxu0 0
        %476 = vmatpush2.bf16.msra.mxu0 0
        %477 = vmatprep.subr.bf16.mxu0 0
        %478 = vmatpush2.bf16.msra.mxu0 0
        %479 = vmatprep.subr.bf16.mxu0 0
        %480 = vmatpush2.bf16.msra.mxu0 0
        %481 = vmatprep.subr.bf16.mxu0 0
        %482 = vmatpush2.bf16.msra.mxu0 0
        %483 = vmatprep.mubr.bf16.mxu0 0
        %484 = vmatmul.mubr.bf16.gmra.mxu0 %v445
        %v485 = vpop.f32.mrf.mxu0
        %v486 = vadd.f32 0.0, %v485
        %v487 = vpop.f32.mrf.mxu0
        %v488 = vpop.f32.mrf.mxu0
        %v489 = vpop.f32.mrf.mxu0
        %490 = vdwg.mxu0
        %v491 = vpack.c.bf16 %v486, %v486
        %492 = vst.msk [vmem:[#allocation2] sm:$0xf] %vm440, %v491
        %493 = vrot.lane.b32.xlu0 %v377, 120
        %v494 = vpop.permute.xlu0 %493
        %495 = vrot.lane.b32.xlu0 %v377, 88
        %v496 = vpop.permute.xlu0 %495
        %v498 = vsel %vm381, %v494, 0
        %v501 = vsel %vm381, %v496, 0
        %503 = vmatprep.subr.bf16.mxu0 0
        %504 = vmatpush1.bf16.xpose.msra.mxu0 0
        %505 = vmatprep.subr.bf16.mxu0 0
        %506 = vmatpush1.bf16.xpose.msra.mxu0 0
        %507 = vmatprep.subr.bf16.mxu0 0
        %508 = vmatpush1.bf16.xpose.msra.mxu0 0
        %509 = vmatprep.subr.bf16.mxu0 0
        %510 = vmatpush1.bf16.xpose.msra.mxu0 0
        %511 = vmatprep.subr.bf16.mxu0 0
        %512 = vmatpush1.bf16.xpose.msra.mxu0 0
        %513 = vmatprep.subr.bf16.mxu0 0
        %514 = vmatpush1.bf16.xpose.msra.mxu0 0
        %515 = vmatprep.subr.bf16.mxu0 0
        %516 = vmatpush1.bf16.xpose.msra.mxu0 0
        %517 = vmatprep.subr.bf16.mxu0 0
        %518 = vmatpush1.bf16.xpose.msra.mxu0 %v501
        %519 = vmatprep.subr.bf16.mxu0 0
        %520 = vmatpush2.bf16.xpose.msra.mxu0 0
        %521 = vmatprep.subr.bf16.mxu0 0
        %522 = vmatpush2.bf16.xpose.msra.mxu0 0
        %523 = vmatprep.subr.bf16.mxu0 0
        %524 = vmatpush2.bf16.xpose.msra.mxu0 0
        %525 = vmatprep.subr.bf16.mxu0 0
        %526 = vmatpush2.bf16.xpose.msra.mxu0 0
        %527 = vmatprep.subr.bf16.mxu0 0
        %528 = vmatpush2.bf16.xpose.msra.mxu0 0
        %529 = vmatprep.subr.bf16.mxu0 0
        %530 = vmatpush2.bf16.xpose.msra.mxu0 0
        %531 = vmatprep.subr.bf16.mxu0 0
        %532 = vmatpush2.bf16.xpose.msra.mxu0 0
        %533 = vmatprep.subr.bf16.mxu0 0
        %534 = vmatpush2.bf16.xpose.msra.mxu0 0
        %535 = vmatprep.mubr.bf16.mxu0 0
        %536 = vmatmul.mubr.bf16.gmra.mxu0 %v498
        %v537 = vpop.f32.mrf.mxu0
        %v538 = vadd.f32 0.0, %v537
        %v539 = vpop.f32.mrf.mxu0
        %v540 = vpop.f32.mrf.mxu0
        %v541 = vpop.f32.mrf.mxu0
        %542 = vdwg.mxu0
        %v543 = vsel %vm381, %v538, -inf
        %544 = vmax.xlane.f32.xlu0 %v543
        %v545 = vpop.xlane.xlu0 %544
        %v546 = vsub.f32 %v538, %v545
        %v547 = vmul.f32 %v546, 1.442695
        %v548 = vpow.pop %v547
        %v549 = vsel %vm381, %v548, 0.0
        %550 = vadd.xlane.f32.xlu0 %v549
        %v551 = vpop.xlane.xlu0 %550
        %v552 = vrcp.pop %v551
        %v553 = vmul.f32 %v548, %v552
        %v554 = vpack.c.bf16 %v553, %v553
        %s555 = scalar_lea.vmem %s306, 4 [#allocation10]
        %556 = vst.msk [vmem:[%s555] sm:$0xf] %vm440, %v554
        %557 = vrot.lane.b32.xlu0 %v377, 56
        %v558 = vpop.permute.xlu0 %557
        %v560 = vsel %vm381, %v554, 0
        %v563 = vsel %vm447, %v558, 0
        %565 = vmatprep.subr.bf16.mxu0 0
        %566 = vmatpush1.bf16.msra.mxu0 0
        %567 = vmatprep.subr.bf16.mxu0 0
        %568 = vmatpush1.bf16.msra.mxu0 0
        %569 = vmatprep.subr.bf16.mxu0 0
        %570 = vmatpush1.bf16.msra.mxu0 0
        %571 = vmatprep.subr.bf16.mxu0 0
        %572 = vmatpush1.bf16.msra.mxu0 0
        %573 = vmatprep.subr.bf16.mxu0 0
        %574 = vmatpush1.bf16.msra.mxu0 0
        %575 = vmatprep.subr.bf16.mxu0 0
        %576 = vmatpush1.bf16.msra.mxu0 0
        %577 = vmatprep.subr.bf16.mxu0 0
        %578 = vmatpush1.bf16.msra.mxu0 0
        %579 = vmatprep.subr.bf16.mxu0 0
        %580 = vmatpush1.bf16.msra.mxu0 %v563
        %581 = vmatprep.subr.bf16.mxu0 0
        %582 = vmatpush2.bf16.msra.mxu0 0
        %583 = vmatprep.subr.bf16.mxu0 0
        %584 = vmatpush2.bf16.msra.mxu0 0
        %585 = vmatprep.subr.bf16.mxu0 0
        %586 = vmatpush2.bf16.msra.mxu0 0
        %587 = vmatprep.subr.bf16.mxu0 0
        %588 = vmatpush2.bf16.msra.mxu0 0
        %589 = vmatprep.subr.bf16.mxu0 0
        %590 = vmatpush2.bf16.msra.mxu0 0
        %591 = vmatprep.subr.bf16.mxu0 0
        %592 = vmatpush2.bf16.msra.mxu0 0
        %593 = vmatprep.subr.bf16.mxu0 0
        %594 = vmatpush2.bf16.msra.mxu0 0
        %595 = vmatprep.subr.bf16.mxu0 0
        %596 = vmatpush2.bf16.msra.mxu0 0
        %597 = vmatprep.mubr.bf16.mxu0 0
        %598 = vmatmul.mubr.bf16.gmra.mxu0 %v560
        %v599 = vpop.f32.mrf.mxu0
        %v600 = vadd.f32 0.0, %v599
        %v601 = vpop.f32.mrf.mxu0
        %v602 = vpop.f32.mrf.mxu0
        %v603 = vpop.f32.mrf.mxu0
        %604 = vdwg.mxu0
        %v605 = vpack.c.bf16 %v600, %v600
        %v607 = vunpack.c.l.b16 %v605
        %v608 = vpack.c.b16 %v607, %v607
        %609 = vrot.lane.b32.xlu0 %v608, 8
        %v610 = vpop.permute.xlu0 %609
        %vm612 = vcmask 126016
        %613 = vst.msk [vmem:[#allocation2] sm:$0xf] %vm612, %v610
        %614 = vrot.lane.b32.xlu0 %v377, 112
        %v615 = vpop.permute.xlu0 %614
        %616 = vrot.lane.b32.xlu0 %v377, 80
        %v617 = vpop.permute.xlu0 %616
        %v619 = vsel %vm381, %v615, 0
        %v622 = vsel %vm381, %v617, 0
        %624 = vmatprep.subr.bf16.mxu0 0
        %625 = vmatpush1.bf16.xpose.msra.mxu0 0
        %626 = vmatprep.subr.bf16.mxu0 0
        %627 = vmatpush1.bf16.xpose.msra.mxu0 0
        %628 = vmatprep.subr.bf16.mxu0 0
        %629 = vmatpush1.bf16.xpose.msra.mxu0 0
        %630 = vmatprep.subr.bf16.mxu0 0
        %631 = vmatpush1.bf16.xpose.msra.mxu0 0
        %632 = vmatprep.subr.bf16.mxu0 0
        %633 = vmatpush1.bf16.xpose.msra.mxu0 0
        %634 = vmatprep.subr.bf16.mxu0 0
        %635 = vmatpush1.bf16.xpose.msra.mxu0 0
        %636 = vmatprep.subr.bf16.mxu0 0
        %637 = vmatpush1.bf16.xpose.msra.mxu0 0
        %638 = vmatprep.subr.bf16.mxu0 0
        %639 = vmatpush1.bf16.xpose.msra.mxu0 %v622
        %640 = vmatprep.subr.bf16.mxu0 0
        %641 = vmatpush2.bf16.xpose.msra.mxu0 0
        %642 = vmatprep.subr.bf16.mxu0 0
        %643 = vmatpush2.bf16.xpose.msra.mxu0 0
        %644 = vmatprep.subr.bf16.mxu0 0
        %645 = vmatpush2.bf16.xpose.msra.mxu0 0
        %646 = vmatprep.subr.bf16.mxu0 0
        %647 = vmatpush2.bf16.xpose.msra.mxu0 0
        %648 = vmatprep.subr.bf16.mxu0 0
        %649 = vmatpush2.bf16.xpose.msra.mxu0 0
        %650 = vmatprep.subr.bf16.mxu0 0
        %651 = vmatpush2.bf16.xpose.msra.mxu0 0
        %652 = vmatprep.subr.bf16.mxu0 0
        %653 = vmatpush2.bf16.xpose.msra.mxu0 0
        %654 = vmatprep.subr.bf16.mxu0 0
        %655 = vmatpush2.bf16.xpose.msra.mxu0 0
        %656 = vmatprep.mubr.bf16.mxu0 0
        %657 = vmatmul.mubr.bf16.gmra.mxu0 %v619
        %v658 = vpop.f32.mrf.mxu0
        %v659 = vadd.f32 0.0, %v658
        %v660 = vpop.f32.mrf.mxu0
        %v661 = vpop.f32.mrf.mxu0
        %v662 = vpop.f32.mrf.mxu0
        %663 = vdwg.mxu0
        %v664 = vsel %vm381, %v659, -inf
        %665 = vmax.xlane.f32.xlu0 %v664
        %v666 = vpop.xlane.xlu0 %665
        %v667 = vsub.f32 %v659, %v666
        %v668 = vmul.f32 %v667, 1.442695
        %v669 = vpow.pop %v668
        %v670 = vsel %vm381, %v669, 0.0
        %671 = vadd.xlane.f32.xlu0 %v670
        %v672 = vpop.xlane.xlu0 %671
        %v673 = vrcp.pop %v672
        %v674 = vmul.f32 %v669, %v673
        %v675 = vpack.c.bf16 %v674, %v674
        %s676 = scalar_lea.vmem %s306, 8 [#allocation10]
        %677 = vst.msk [vmem:[%s676] sm:$0xf] %vm440, %v675
        %678 = vrot.lane.b32.xlu0 %v377, 48
        %v679 = vpop.permute.xlu0 %678
        %v681 = vsel %vm381, %v675, 0
        %v684 = vsel %vm447, %v679, 0
        %686 = vmatprep.subr.bf16.mxu0 0
        %687 = vmatpush1.bf16.msra.mxu0 0
        %688 = vmatprep.subr.bf16.mxu0 0
        %689 = vmatpush1.bf16.msra.mxu0 0
        %690 = vmatprep.subr.bf16.mxu0 0
        %691 = vmatpush1.bf16.msra.mxu0 0
        %692 = vmatprep.subr.bf16.mxu0 0
        %693 = vmatpush1.bf16.msra.mxu0 0
        %694 = vmatprep.subr.bf16.mxu0 0
        %695 = vmatpush1.bf16.msra.mxu0 0
        %696 = vmatprep.subr.bf16.mxu0 0
        %697 = vmatpush1.bf16.msra.mxu0 0
        %698 = vmatprep.subr.bf16.mxu0 0
        %699 = vmatpush1.bf16.msra.mxu0 0
        %700 = vmatprep.subr.bf16.mxu0 0
        %701 = vmatpush1.bf16.msra.mxu0 %v684
        %702 = vmatprep.subr.bf16.mxu0 0
        %703 = vmatpush2.bf16.msra.mxu0 0
        %704 = vmatprep.subr.bf16.mxu0 0
        %705 = vmatpush2.bf16.msra.mxu0 0
        %706 = vmatprep.subr.bf16.mxu0 0
        %707 = vmatpush2.bf16.msra.mxu0 0
        %708 = vmatprep.subr.bf16.mxu0 0
        %709 = vmatpush2.bf16.msra.mxu0 0
        %710 = vmatprep.subr.bf16.mxu0 0
        %711 = vmatpush2.bf16.msra.mxu0 0
        %712 = vmatprep.subr.bf16.mxu0 0
        %713 = vmatpush2.bf16.msra.mxu0 0
        %714 = vmatprep.subr.bf16.mxu0 0
        %715 = vmatpush2.bf16.msra.mxu0 0
        %716 = vmatprep.subr.bf16.mxu0 0
        %717 = vmatpush2.bf16.msra.mxu0 0
        %718 = vmatprep.mubr.bf16.mxu0 0
        %719 = vmatmul.mubr.bf16.gmra.mxu0 %v681
        %v720 = vpop.f32.mrf.mxu0
        %v721 = vadd.f32 0.0, %v720
        %v722 = vpop.f32.mrf.mxu0
        %v723 = vpop.f32.mrf.mxu0
        %v724 = vpop.f32.mrf.mxu0
        %725 = vdwg.mxu0
        %v726 = vpack.c.bf16 %v721, %v721
        %v728 = vunpack.c.l.b16 %v726
        %v729 = vpack.c.b16 %v728, %v728
        %730 = vrot.lane.b32.xlu0 %v729, 16
        %v731 = vpop.permute.xlu0 %730
        %vm733 = vcmask 191616
        %734 = vst.msk [vmem:[#allocation2] sm:$0xf] %vm733, %v731
        %735 = vrot.lane.b32.xlu0 %v377, 104
        %v736 = vpop.permute.xlu0 %735
        %737 = vrot.lane.b32.xlu0 %v377, 72
        %v738 = vpop.permute.xlu0 %737
        %v740 = vsel %vm381, %v736, 0
        %v743 = vsel %vm381, %v738, 0
        %745 = vmatprep.subr.bf16.mxu0 0
        %746 = vmatpush1.bf16.xpose.msra.mxu0 0
        %747 = vmatprep.subr.bf16.mxu0 0
        %748 = vmatpush1.bf16.xpose.msra.mxu0 0
        %749 = vmatprep.subr.bf16.mxu0 0
        %750 = vmatpush1.bf16.xpose.msra.mxu0 0
        %751 = vmatprep.subr.bf16.mxu0 0
        %752 = vmatpush1.bf16.xpose.msra.mxu0 0
        %753 = vmatprep.subr.bf16.mxu0 0
        %754 = vmatpush1.bf16.xpose.msra.mxu0 0
        %755 = vmatprep.subr.bf16.mxu0 0
        %756 = vmatpush1.bf16.xpose.msra.mxu0 0
        %757 = vmatprep.subr.bf16.mxu0 0
        %758 = vmatpush1.bf16.xpose.msra.mxu0 0
        %759 = vmatprep.subr.bf16.mxu0 0
        %760 = vmatpush1.bf16.xpose.msra.mxu0 %v743
        %761 = vmatprep.subr.bf16.mxu0 0
        %762 = vmatpush2.bf16.xpose.msra.mxu0 0
        %763 = vmatprep.subr.bf16.mxu0 0
        %764 = vmatpush2.bf16.xpose.msra.mxu0 0
        %765 = vmatprep.subr.bf16.mxu0 0
        %766 = vmatpush2.bf16.xpose.msra.mxu0 0
        %767 = vmatprep.subr.bf16.mxu0 0
        %768 = vmatpush2.bf16.xpose.msra.mxu0 0
        %769 = vmatprep.subr.bf16.mxu0 0
        %770 = vmatpush2.bf16.xpose.msra.mxu0 0
        %771 = vmatprep.subr.bf16.mxu0 0
        %772 = vmatpush2.bf16.xpose.msra.mxu0 0
        %773 = vmatprep.subr.bf16.mxu0 0
        %774 = vmatpush2.bf16.xpose.msra.mxu0 0
        %775 = vmatprep.subr.bf16.mxu0 0
        %776 = vmatpush2.bf16.xpose.msra.mxu0 0
        %777 = vmatprep.mubr.bf16.mxu0 0
        %778 = vmatmul.mubr.bf16.gmra.mxu0 %v740
        %v779 = vpop.f32.mrf.mxu0
        %v780 = vadd.f32 0.0, %v779
        %v781 = vpop.f32.mrf.mxu0
        %v782 = vpop.f32.mrf.mxu0
        %v783 = vpop.f32.mrf.mxu0
        %784 = vdwg.mxu0
        %v785 = vsel %vm381, %v780, -inf
        %786 = vmax.xlane.f32.xlu0 %v785
        %v787 = vpop.xlane.xlu0 %786
        %v788 = vsub.f32 %v780, %v787
        %v789 = vmul.f32 %v788, 1.442695
        %v790 = vpow.pop %v789
        %v791 = vsel %vm381, %v790, 0.0
        %792 = vadd.xlane.f32.xlu0 %v791
        %v793 = vpop.xlane.xlu0 %792
        %v794 = vrcp.pop %v793
        %v795 = vmul.f32 %v790, %v794
        %v796 = vpack.c.bf16 %v795, %v795
        %s797 = scalar_lea.vmem %s306, 12 [#allocation10]
        %798 = vst.msk [vmem:[%s797] sm:$0xf] %vm440, %v796
        %799 = vrot.lane.b32.xlu0 %v377, 40
        %v800 = vpop.permute.xlu0 %799
        %v802 = vsel %vm381, %v796, 0
        %v805 = vsel %vm447, %v800, 0
        %807 = vmatprep.subr.bf16.mxu0 0
        %808 = vmatpush1.bf16.msra.mxu0 0
        %809 = vmatprep.subr.bf16.mxu0 0
        %810 = vmatpush1.bf16.msra.mxu0 0
        %811 = vmatprep.subr.bf16.mxu0 0
        %812 = vmatpush1.bf16.msra.mxu0 0
        %813 = vmatprep.subr.bf16.mxu0 0
        %814 = vmatpush1.bf16.msra.mxu0 0
        %815 = vmatprep.subr.bf16.mxu0 0
        %816 = vmatpush1.bf16.msra.mxu0 0
        %817 = vmatprep.subr.bf16.mxu0 0
        %818 = vmatpush1.bf16.msra.mxu0 0
        %819 = vmatprep.subr.bf16.mxu0 0
        %820 = vmatpush1.bf16.msra.mxu0 0
        %821 = vmatprep.subr.bf16.mxu0 0
        %822 = vmatpush1.bf16.msra.mxu0 %v805
        %823 = vmatprep.subr.bf16.mxu0 0
        %824 = vmatpush2.bf16.msra.mxu0 0
        %825 = vmatprep.subr.bf16.mxu0 0
        %826 = vmatpush2.bf16.msra.mxu0 0
        %827 = vmatprep.subr.bf16.mxu0 0
        %828 = vmatpush2.bf16.msra.mxu0 0
        %829 = vmatprep.subr.bf16.mxu0 0
        %830 = vmatpush2.bf16.msra.mxu0 0
        %831 = vmatprep.subr.bf16.mxu0 0
        %832 = vmatpush2.bf16.msra.mxu0 0
        %833 = vmatprep.subr.bf16.mxu0 0
        %834 = vmatpush2.bf16.msra.mxu0 0
        %835 = vmatprep.subr.bf16.mxu0 0
        %836 = vmatpush2.bf16.msra.mxu0 0
        %837 = vmatprep.subr.bf16.mxu0 0
        %838 = vmatpush2.bf16.msra.mxu0 0
        %839 = vmatprep.mubr.bf16.mxu0 0
        %840 = vmatmul.mubr.bf16.gmra.mxu0 %v802
        %v841 = vpop.f32.mrf.mxu0
        %v842 = vadd.f32 0.0, %v841
        %v843 = vpop.f32.mrf.mxu0
        %v844 = vpop.f32.mrf.mxu0
        %v845 = vpop.f32.mrf.mxu0
        %846 = vdwg.mxu0
        %v847 = vpack.c.bf16 %v842, %v842
        %v849 = vunpack.c.l.b16 %v847
        %v850 = vpack.c.b16 %v849, %v849
        %851 = vrot.lane.b32.xlu0 %v850, 24
        %v852 = vpop.permute.xlu0 %851
        %vm854 = vcmask 257216
        %855 = vst.msk [vmem:[#allocation2] sm:$0xf] %vm854, %v852
        %v856 = vld [vmem:[#allocation2] sm:$0xf]
        %v857 = vld [vmem:[#allocation8] sm:$0xf]
        %v858 = vld [vmem:[#allocation8 + $0x4] sm:$0xf]
        %v859 = vld [vmem:[#allocation8 + $0x8] sm:$0xf]
        %v860 = vld [vmem:[#allocation8 + $0xc] sm:$0xf]
        %v861 = vld [vmem:[%s4] sm:$0x1]
        %v863 = vlaneseq
        %v864 = vshrl.u32 %v863, 7
        %v865 = vsub.s32 0, %v864
        %v866 = vrot.slane %v861, %v865
        %v872 = vunpack.c.l.b16 %v857
        %v873 = vunpack.c.l.b16 %v858
        %v874 = vunpack.c.l.b16 %v859
        %v875 = vunpack.c.l.b16 %v860
        %v876 = vpack.c.b16 %v873, %v872
        %v877 = vpack.c.b16 %v875, %v874
        %v881 = vsel %vm333, %v856, 0
        %883 = vmatprep.subr.bf16.mxu0 0
        %884 = vmatpush1.bf16.msra.mxu0 0
        %885 = vmatprep.subr.bf16.mxu0 0
        %886 = vmatpush1.bf16.msra.mxu0 0
        %887 = vmatprep.subr.bf16.mxu0 0
        %888 = vmatpush1.bf16.msra.mxu0 0
        %889 = vmatprep.subr.bf16.mxu0 0
        %890 = vmatpush1.bf16.msra.mxu0 0
        %891 = vmatprep.subr.bf16.mxu0 0
        %892 = vmatpush1.bf16.msra.mxu0 0
        %893 = vmatprep.subr.bf16.mxu0 0
        %894 = vmatpush1.bf16.msra.mxu0 0
        %895 = vmatprep.subr.bf16.mxu0 0
        %896 = vmatpush1.bf16.msra.mxu0 %v877
        %897 = vmatprep.subr.bf16.mxu0 0
        %898 = vmatpush1.bf16.msra.mxu0 %v876
        %899 = vmatprep.subr.bf16.mxu0 0
        %900 = vmatpush2.bf16.msra.mxu0 0
        %901 = vmatprep.subr.bf16.mxu0 0
        %902 = vmatpush2.bf16.msra.mxu0 0
        %903 = vmatprep.subr.bf16.mxu0 0
        %904 = vmatpush2.bf16.msra.mxu0 0
        %905 = vmatprep.subr.bf16.mxu0 0
        %906 = vmatpush2.bf16.msra.mxu0 0
        %907 = vmatprep.subr.bf16.mxu0 0
        %908 = vmatpush2.bf16.msra.mxu0 0
        %909 = vmatprep.subr.bf16.mxu0 0
        %910 = vmatpush2.bf16.msra.mxu0 0
        %911 = vmatprep.subr.bf16.mxu0 0
        %912 = vmatpush2.bf16.msra.mxu0 0
        %913 = vmatprep.subr.bf16.mxu0 0
        %914 = vmatpush2.bf16.msra.mxu0 0
        %915 = vmatprep.mubr.bf16.mxu0 0
        %916 = vmatmul.mubr.bf16.gmra.mxu0 %v881
        %v917 = vpop.f32.mrf.mxu0
        %v918 = vadd.f32 %v866, %v917
        %v919 = vpop.f32.mrf.mxu0
        %v920 = vpop.f32.mrf.mxu0
        %v921 = vpop.f32.mrf.mxu0
        %922 = vdwg.mxu0
        %923 = vst.msk [vmem:[%s299] sm:$0xff] %vm333, %v918
        %s924 = sand.u32 %s146, 1
        %s925 = scalar_lea.sflag [#allocation5], %s924
        %s926 = sand.u32 %s146, 1
        %s927 = smul.addr %s926, 8
        %s928 = scalar_lea.vmem [#allocation9], %s927
        %s929 = sand.u32 %s172, 1
        %s930 = scalar_lea.sflag [#allocation11], %s929
        %s931 = sand.u32 %s172, 1
        %s932 = smul.addr %s931, 16
        %s933 = scalar_lea.vmem [#allocation10], %s932
        // Predicated region
        $region53: #{tpu_custom_call.1} parent=39 // pred_check
          %p934 = pneg %p156
        $region54: #{tpu_custom_call.1} parent=39 // pred_check_branch
          %936 = sbr.rel (%p934) target = $region56
        $region55: #{tpu_custom_call.1} parent=39 // pred_region
          %s938 = ssub.s32 128, 128
          %939 = vsyncadd %s925, %s938
          %s940 = smul.addr %s28, 128
          %s941 = scalar_lea.hbm %s5, %s940
          %s943 = sshll.u32 %s928, 4
          %s944 = int_to_ptr.vmem [resolvable:$true] %s943
          %946 = dma.vmem_to_hbm [thread:$0]  %s944, 128, %s941, %s925
        $region56: #{tpu_custom_call.1} parent=39 // pred_fallthru
          _
        // Predicated region
        $region57: #{tpu_custom_call.1} parent=39 // pred_check
          %p947 = pneg %p182
        $region58: #{tpu_custom_call.1} parent=39 // pred_check_branch
          %949 = sbr.rel (%p947) target = $region60
        $region59: #{tpu_custom_call.1} parent=39 // pred_region
          %s951 = ssub.s32 256, 256
          %952 = vsyncadd %s930, %s951
          %s953 = smul.addr %s28, 4
          %s954 = smul.addr %s953, 64
          %s955 = scalar_lea.hbm %s6, %s954
          %s956 = sshll.u32 %s933, 4
          %s957 = int_to_ptr.vmem [resolvable:$true] %s956
          %962 = dma.vmem_to_hbm [thread:$0]  %s957, 256, %s955, %s930, 64, 64, 4
        $region60: #{tpu_custom_call.1} parent=39 // pred_fallthru
          _
      $region40: #{tpu_custom_call.1} parent=5 // pred_fallthru
        _
      %p963 = scmp.le.s32.totalorder 2, %s23
      // Predicated region
      $region61: #{tpu_custom_call.1} parent=5 // pred_check
        %p964 = pneg %p963
      $region62: #{tpu_custom_call.1} parent=5 // pred_check_branch
        %966 = sbr.rel (%p964) target = $region64
      $region63: #{tpu_custom_call.1} parent=5 // pred_region
        %s967 = ssub.s32 %s23, 2
        // Predicated region
        $region65: #{tpu_custom_call.1} parent=63 // pred_check
          %p968 = pneg %p162
        $region66: #{tpu_custom_call.1} parent=63 // pred_check_branch
          %970 = sbr.rel (%p968) target = $region68
        $region67: #{tpu_custom_call.1} parent=63 // pred_region
          %s971 = sand.u32 %s147, 1
          %s972 = scalar_lea.sflag [#allocation5], %s971
          %s973 = sand.u32 %s147, 1
          %s974 = smul.addr %s973, 8
          %s975 = scalar_lea.vmem [#allocation9], %s974
          %976 = dma.done %s972, 128
        $region68: #{tpu_custom_call.1} parent=63 // pred_fallthru
          _
        // Predicated region
        $region69: #{tpu_custom_call.1} parent=63 // pred_check
          %p977 = pneg %p188
        $region70: #{tpu_custom_call.1} parent=63 // pred_check_branch
          %979 = sbr.rel (%p977) target = $region72
        $region71: #{tpu_custom_call.1} parent=63 // pred_region
          %s980 = sand.u32 %s173, 1
          %s981 = scalar_lea.sflag [#allocation11], %s980
          %s982 = sand.u32 %s173, 1
          %s983 = smul.addr %s982, 16
          %s984 = scalar_lea.vmem [#allocation10], %s983
          %985 = dma.done %s981, 256
        $region72: #{tpu_custom_call.1} parent=63 // pred_fallthru
          _
      $region64: #{tpu_custom_call.1} parent=5 // pred_fallthru
        _
    $region6: #{tpu_custom_call.1} parent=1 // loop_footer
      %s27 = sadd.s32 1, %s23
    $region7: #{tpu_custom_call.1} parent=1 // loop_footer_branch
      %22 = sbr.rel target = $region3
    $region8: #{tpu_custom_call.1} parent=1 // loop_exit
      _
    %986 = vsyncpa [#allocation4], 1
    %s987 = scalar_lea.sflag [#allocation4], 1
    %988 = vsyncpa %s987, 1
    %989 = vsyncpa [#allocation7], 1
    %990 = vsyncpa [#allocation5], 1
    %s991 = scalar_lea.sflag [#allocation5], 1
    %992 = vsyncpa %s991, 1
    %993 = vsyncpa [#allocation11], 1
    %s994 = scalar_lea.sflag [#allocation11], 1
    %995 = vsyncpa %s994, 1

</llo_original>
